<compile_context>
chip_gen: v5e
topology: v5e:2x2
jax: 0.10.0
libtpu: 0.0.40
codegen_flags: <defaults>
</compile_context>

<pallas_src>
import jax
import jax.numpy as jnp
from jax import lax
from jax.experimental import pallas as pl
from jax.experimental.pallas import tpu as pltpu

_LANE = 128
_SUBLANE = 8


# ----------------------------------------------------------------------------
# VMEM-capacity-aware tile sizing
# ----------------------------------------------------------------------------
def _vmem_capacity():
    try:
        return int(pltpu.get_tpu_info().vmem_capacity_bytes)
    except Exception:
        return 64 * 1024 * 1024  # conservative (v7x per-TC)


def _block_budget():
    cap = _vmem_capacity()
    return max(512 * 1024, min(4 * 1024 * 1024, cap // 16))


def _vmem_limit(block_bytes):
    cap = _vmem_capacity()
    want = 3 * int(block_bytes) + 4 * 1024 * 1024   # double buffer + margin
    lim = max(16 * 1024 * 1024, want)
    return int(min(lim, max(cap // 2, 16 * 1024 * 1024)))


def _lane_tile(S, C, N):
    """Lane tile (multiple of 128) for the (1, C, ts) blocks of the ND path."""
    budget = _block_budget()
    c_pad = pl.cdiv(C, _SUBLANE) * _SUBLANE          # sublane-padded class rows
    ts = (budget // (c_pad * 4)) // _LANE * _LANE
    ts = max(_LANE, min(32 * 1024, ts))
    if S < _LANE:
        return _LANE                                  # caller pads S up to 128
    ts = min(ts, (S // _LANE) * _LANE)                # block never exceeds S
    # Megacore: guarantee >= 2 grid steps when there is enough work.
    if N * pl.cdiv(S, ts) < 2 and S >= 2 * _LANE:
        half = pl.cdiv(pl.cdiv(S, 2), _LANE) * _LANE
        ts = min(ts, half)
    return ts


def _row_tile(M, C):
    """Row tile (multiple of 8) for the (tm, C) blocks of the 2D path."""
    budget = _block_budget()
    c_lanes = pl.cdiv(C, _LANE) * _LANE
    tm = (budget // (c_lanes * 4)) // _SUBLANE * _SUBLANE
    tm = max(_SUBLANE, min(4096, tm))
    if M < _SUBLANE:
        return _SUBLANE                               # caller pads M up to 8
    tm = min(tm, (M // _SUBLANE) * _SUBLANE)
    if pl.cdiv(M, tm) < 2 and M >= 2 * _SUBLANE:
        half = pl.cdiv(pl.cdiv(M, 2), _SUBLANE) * _SUBLANE
        tm = min(tm, half)
    return tm


# ----------------------------------------------------------------------------
# ND path: (N, C, S) with classes on sublanes, spatial on lanes
# ----------------------------------------------------------------------------
def _loss_row_3d(logits_ref, tgt_ref, w_ref, ts, s_valid):
    """Per-position weighted NLL for one (C, ts) tile, ragged tail masked."""
    x = logits_ref[0].astype(jnp.float32)            # (C, ts)
    t = tgt_ref[0]                                    # (1, ts) int32
    w = w_ref[...].astype(jnp.float32)                # (C, 1)

    m = jnp.max(x, axis=0, keepdims=True)             # (1, ts)
    xm = x - m                                        # reused for exp and gather
    lse = jnp.log(jnp.sum(jnp.exp(xm), axis=0, keepdims=True))   # shifted lse

    cls = lax.broadcasted_iota(jnp.int32, x.shape, 0)             # (C, ts)
    onehot = cls == t                                             # (C, ts)
    picked = jnp.sum(jnp.where(onehot, xm, 0.0), axis=0, keepdims=True)  # (1, ts)
    w_sel = jnp.sum(jnp.where(onehot, w, 0.0), axis=0, keepdims=True)    # (1, ts)

    loss = (lse - picked) * w_sel                     # (1, ts)
    lane = lax.broadcasted_iota(jnp.int32, loss.shape, 1)
    valid = (pl.program_id(1) * ts + lane) < s_valid
    return jnp.where(valid, loss, 0.0)


def _make_sum_kernel_3d(ts, s_valid):
    def kernel(logits_ref, tgt_ref, w_ref, part_ref):
        loss = _loss_row_3d(logits_ref, tgt_ref, w_ref, ts, s_valid)
        tile_sum = jnp.sum(loss)                      # lane reduce (XLU slot)
        part_ref[...] = jnp.ones(part_ref.shape, jnp.float32) * tile_sum
    return kernel


def _make_map_kernel_3d(ts, s_valid):
    def kernel(logits_ref, tgt_ref, w_ref, loss_ref):
        loss_ref[0] = _loss_row_3d(logits_ref, tgt_ref, w_ref, ts, s_valid)
    return kernel


def _prep_3d(lg, tgt):
    N, C, S = lg.shape
    s_orig = S
    if S < _LANE:                                     # tiny pad only in this corner case
        pad = _LANE - S
        lg = jnp.pad(lg, ((0, 0), (0, 0), (0, pad)))
        tgt = jnp.pad(tgt, ((0, 0), (0, pad)), constant_values=-1)
        S = _LANE
    return lg, tgt.reshape(N, 1, S).astype(jnp.int32), S, s_orig


def _nll_blocks_3d(N, C, S, ts, weight):
    w2d = jnp.asarray(weight, jnp.float32).reshape(C, 1)
    in_specs = [
        pl.BlockSpec((1, C, ts), lambda n, s: (n, 0, s)),   # logits (lane-dense)
        pl.BlockSpec((1, 1, ts), lambda n, s: (n, 0, s)),   # targets
        pl.BlockSpec((C, 1), lambda n, s: (0, 0)),          # class weights (resident)
    ]
    c_pad = pl.cdiv(C, _SUBLANE) * _SUBLANE
    block_bytes = (c_pad + 2 * _SUBLANE) * ts * 4
    return w2d, in_specs, block_bytes


def _weighted_nll_sum_3d(lg, tgt, weight):
    """Returns the scalar sum of weighted NLL over all (n, s) positions."""
    lg, tgt3, S, s_orig = _prep_3d(lg, tgt)
    N, C, _ = lg.shape
    ts = _lane_tile(S, C, N)
    n_tiles = pl.cdiv(S, ts)
    w2d, in_specs, block_bytes = _nll_blocks_3d(N, C, S, ts, weight)

    partials = pl.pallas_call(
        _make_sum_kernel_3d(ts, s_orig),
        out_shape=jax.ShapeDtypeStruct((N, n_tiles, _SUBLANE, _LANE), jnp.float32),
        grid_spec=pltpu.PrefetchScalarGridSpec(
            num_scalar_prefetch=0,
            grid=(N, n_tiles),
            in_specs=in_specs,
            out_specs=pl.BlockSpec((1, 1, _SUBLANE, _LANE), lambda n, s: (n, s, 0, 0)),
        ),
        compiler_params=pltpu.CompilerParams(
            dimension_semantics=("parallel", "parallel"),
            vmem_limit_bytes=_vmem_limit(block_bytes),
        ),
    )(lg, tgt3, w2d)
    return jnp.sum(partials[:, :, 0, 0])


def _weighted_nll_map_3d(lg, tgt, weight):
    """Returns the per-position weighted NLL map of shape (N, S)."""
    lg, tgt3, S, s_orig = _prep_3d(lg, tgt)
    N, C, _ = lg.shape
    ts = _lane_tile(S, C, N)
    n_tiles = pl.cdiv(S, ts)
    w2d, in_specs, block_bytes = _nll_blocks_3d(N, C, S, ts, weight)

    loss = pl.pallas_call(
        _make_map_kernel_3d(ts, s_orig),
        out_shape=jax.ShapeDtypeStruct((N, 1, S), jnp.float32),
        grid_spec=pltpu.PrefetchScalarGridSpec(
            num_scalar_prefetch=0,
            grid=(N, n_tiles),
            in_specs=in_specs,
            out_specs=pl.BlockSpec((1, 1, ts), lambda n, s: (n, 0, s)),
        ),
        compiler_params=pltpu.CompilerParams(
            dimension_semantics=("parallel", "parallel"),
            vmem_limit_bytes=_vmem_limit(block_bytes + _SUBLANE * ts * 4),
        ),
    )(lg, tgt3, w2d)
    return loss.reshape(N, S)[:, :s_orig]


# ----------------------------------------------------------------------------
# 2D path: (M, C) with rows on sublanes, classes on lanes (no transpose)
# ----------------------------------------------------------------------------
def _loss_col_2d(logits_ref, tgt_ref, w_ref, tm, m_valid):
    x = logits_ref[...].astype(jnp.float32)           # (tm, C)
    t = tgt_ref[...]                                   # (tm, 1) int32
    w = w_ref[...].astype(jnp.float32)                 # (1, C)

    m = jnp.max(x, axis=1, keepdims=True)              # (tm, 1)
    xm = x - m
    lse = jnp.log(jnp.sum(jnp.exp(xm), axis=1, keepdims=True))   # shifted lse

    cls = lax.broadcasted_iota(jnp.int32, x.shape, 1)
    onehot = cls == t
    picked = jnp.sum(jnp.where(onehot, xm, 0.0), axis=1, keepdims=True)
    w_sel = jnp.sum(jnp.where(onehot, w, 0.0), axis=1, keepdims=True)

    loss = (lse - picked) * w_sel                      # (tm, 1)
    row = lax.broadcasted_iota(jnp.int32, loss.shape, 0)
    valid = (pl.program_id(0) * tm + row) < m_valid
    return jnp.where(valid, loss, 0.0)


def _make_sum_kernel_2d(tm, m_valid):
    def kernel(logits_ref, tgt_ref, w_ref, part_ref):
        loss = _loss_col_2d(logits_ref, tgt_ref, w_ref, tm, m_valid)
        tile_sum = jnp.sum(loss)
        part_ref[...] = jnp.ones(part_ref.shape, jnp.float32) * tile_sum
    return kernel


def _make_map_kernel_2d(tm, m_valid):
    def kernel(logits_ref, tgt_ref, w_ref, loss_ref):
        loss_ref[...] = _loss_col_2d(logits_ref, tgt_ref, w_ref, tm, m_valid)
    return kernel


def _prep_2d(lg, tgt):
    M, C = lg.shape
    m_orig = M
    if M < _SUBLANE:
        pad = _SUBLANE - M
        lg = jnp.pad(lg, ((0, pad), (0, 0)))
        tgt = jnp.pad(tgt, ((0, pad),), constant_values=-1)
        M = _SUBLANE
    return lg, tgt.reshape(M, 1).astype(jnp.int32), M, m_orig


def _nll_blocks_2d(M, C, tm, weight):
    w2d = jnp.asarray(weight, jnp.float32).reshape(1, C)
    in_specs = [
        pl.BlockSpec((tm, C), lambda i: (i, 0)),       # logits rows x classes
        pl.BlockSpec((tm, 1), lambda i: (i, 0)),       # targets
        pl.BlockSpec((1, C), lambda i: (0, 0)),        # class weights (resident)
    ]
    c_lanes = pl.cdiv(C, _LANE) * _LANE
    block_bytes = (tm * c_lanes + tm * _LANE + _SUBLANE * c_lanes) * 4
    return w2d, in_specs, block_bytes


def _weighted_nll_sum_2d(lg, tgt, weight):
    lg, tgt2, M, m_orig = _prep_2d(lg, tgt)
    _, C = lg.shape
    tm = _row_tile(M, C)
    n_tiles = pl.cdiv(M, tm)
    w2d, in_specs, block_bytes = _nll_blocks_2d(M, C, tm, weight)

    partials = pl.pallas_call(
        _make_sum_kernel_2d(tm, m_orig),
        out_shape=jax.ShapeDtypeStruct((n_tiles, _SUBLANE, _LANE), jnp.float32),
        grid_spec=pltpu.PrefetchScalarGridSpec(
            num_scalar_prefetch=0,
            grid=(n_tiles,),
            in_specs=in_specs,
            out_specs=pl.BlockSpec((1, _SUBLANE, _LANE), lambda i: (i, 0, 0)),
        ),
        compiler_params=pltpu.CompilerParams(
            dimension_semantics=("parallel",),
            vmem_limit_bytes=_vmem_limit(block_bytes),
        ),
    )(lg, tgt2, w2d)
    return jnp.sum(partials[:, 0, 0])


def _weighted_nll_map_2d(lg, tgt, weight):
    lg, tgt2, M, m_orig = _prep_2d(lg, tgt)
    _, C = lg.shape
    tm = _row_tile(M, C)
    n_tiles = pl.cdiv(M, tm)
    w2d, in_specs, block_bytes = _nll_blocks_2d(M, C, tm, weight)

    loss = pl.pallas_call(
        _make_map_kernel_2d(tm, m_orig),
        out_shape=jax.ShapeDtypeStruct((M, 1), jnp.float32),
        grid_spec=pltpu.PrefetchScalarGridSpec(
            num_scalar_prefetch=0,
            grid=(n_tiles,),
            in_specs=in_specs,
            out_specs=pl.BlockSpec((tm, 1), lambda i: (i, 0)),
        ),
        compiler_params=pltpu.CompilerParams(
            dimension_semantics=("parallel",),
            vmem_limit_bytes=_vmem_limit(block_bytes),
        ),
    )(lg, tgt2, w2d)
    return loss[:m_orig]


# ----------------------------------------------------------------------------
# Public API: mirrors lossFunction.forward
# ----------------------------------------------------------------------------
def loss_function(logits, target, weight, reduction="mean"):
    """JAX/Pallas equivalent of lossFunction.forward.

    'mean' divides by the element count (matches the reference's manual
    weighting + .mean(), NOT nn.NLLLoss weighted-mean normalization).
    """
    weight = jnp.asarray(weight, jnp.float32)
    # TODO(synk): vocab-scale C needs a class-axis "arbitrary" grid dim with
    # online-logsumexp scratch; current blocks assume the full class row fits VMEM.
    if logits.ndim > 2:
        N, C = logits.shape[0], logits.shape[1]
        S = 1
        for d in logits.shape[2:]:
            S *= d
        lg = logits.reshape(N, C, S)                 # native layout, no transpose
        tgt = target.reshape(N, S)
        M = N * S
        if reduction == "mean":
            return _weighted_nll_sum_3d(lg, tgt, weight) / jnp.float32(M)
        if reduction == "sum":
            return _weighted_nll_sum_3d(lg, tgt, weight)
        return _weighted_nll_map_3d(lg, tgt, weight).reshape(-1, 1)
    else:
        M, C = logits.shape
        tgt = target.reshape(M)
        if reduction == "mean":
            return _weighted_nll_sum_2d(logits, tgt, weight) / jnp.float32(M)
        if reduction == "sum":
            return _weighted_nll_sum_2d(logits, tgt, weight)
        return _weighted_nll_map_2d(logits, tgt, weight)


if __name__ == "__main__":
    key = jax.random.PRNGKey(0)
    k1, k2, k3, k4, k5 = jax.random.split(key, 5)

    # ---- 4D NCHW case (N=2, C=4, H=W=16) ----
    N, C, H, W = 2, 4, 16, 16
    logits = jax.random.normal(k1, (N, C, H, W), dtype=jnp.float32)
    target = jax.random.randint(k2, (N, H, W), 0, C, dtype=jnp.int32)
    weight = jax.random.uniform(k3, (C,), dtype=jnp.float32, minval=0.5, maxval=1.5)

    loss_mean = loss_function(logits, target, weight, reduction="mean")
    loss_sum = loss_function(logits, target, weight, reduction="sum")
    loss_none = loss_function(logits, target, weight, reduction="none")
    jax.block_until_ready((loss_mean, loss_sum, loss_none))

    # pure-JAX reference (mirrors the PyTorch forward exactly)
    lg_ref = jnp.transpose(logits.reshape(N, C, -1), (0, 2, 1)).reshape(-1, C)
    tg = target.reshape(-1)
    logp = jax.nn.log_softmax(lg_ref, axis=1)
    per = -logp[jnp.arange(tg.shape[0]), tg] * weight[tg]
    assert jnp.allclose(loss_mean, jnp.mean(per), rtol=1e-5, atol=1e-5), (loss_mean, jnp.mean(per))
    assert jnp.allclose(loss_sum, jnp.sum(per), rtol=1e-5, atol=1e-4), (loss_sum, jnp.sum(per))
    assert jnp.allclose(loss_none.reshape(-1), per, rtol=1e-5, atol=1e-5)

    # ---- 2D (rows, classes) case with ragged rows, no transpose path ----
    M2, C2 = 37, 5
    logits2 = jax.random.normal(k4, (M2, C2), dtype=jnp.float32)
    target2 = jax.random.randint(k5, (M2,), 0, C2, dtype=jnp.int32)
    weight2 = jnp.linspace(0.5, 1.5, C2, dtype=jnp.float32)

    loss2_mean = loss_function(logits2, target2, weight2, reduction="mean")
    jax.block_until_ready(loss2_mean)
    logp2 = jax.nn.log_softmax(logits2, axis=1)
    per2 = -logp2[jnp.arange(M2), target2] * weight2[target2]
    assert jnp.allclose(loss2_mean, jnp.mean(per2), rtol=1e-5, atol=1e-5), (loss2_mean, jnp.mean(per2))

    print("KERNEL_OK")
</pallas_src>

<mosaic_0001>
module attributes {stable_mosaic.version = 11 : i64} {
  func.func @kernel(%arg0: i32, %arg1: i32, %arg2: memref<1x4x256xf32, #tpu.memory_space<vmem>>, %arg3: memref<1x1x256xi32, #tpu.memory_space<vmem>>, %arg4: memref<4x1xf32, #tpu.memory_space<vmem>>, %arg5: memref<1x1x8x128xf32, #tpu.memory_space<vmem>>) attributes {dimension_semantics = [#tpu.dimension_semantics<parallel>, #tpu.dimension_semantics<parallel>], iteration_bounds = array<i64: 2, 1>, scalar_prefetch = 0 : i64, scratch_operands = 0 : i64, tpu.core_type = #tpu.core_type<tc>, window_params = [{transform_indices = @transform_0, window_bounds = array<i64: 1, 4, 256>}, {transform_indices = @transform_1, window_bounds = array<i64: 1, 1, 256>}, {pipeline_mode = #tpu.pipeline_mode<synchronous>, transform_indices = @transform_2, window_bounds = array<i64: 4, 1>}, {transform_indices = @transform_3, window_bounds = array<i64: 1, 1, 8, 128>}]} {
    %c0 = arith.constant 0 : index
    %c0_0 = arith.constant 0 : index
    %c0_1 = arith.constant 0 : index
    %0 = vector.load %arg2[%c0, %c0_0, %c0_1] : memref<1x4x256xf32, #tpu.memory_space<vmem>>, vector<1x4x256xf32>
    %1 = vector.shape_cast %0 : vector<1x4x256xf32> to vector<4x256xf32>
    %c0_2 = arith.constant 0 : index
    %c0_3 = arith.constant 0 : index
    %c0_4 = arith.constant 0 : index
    %2 = vector.load %arg3[%c0_2, %c0_3, %c0_4] : memref<1x1x256xi32, #tpu.memory_space<vmem>>, vector<1x1x256xi32>
    %3 = vector.shape_cast %2 : vector<1x1x256xi32> to vector<1x256xi32>
    %c0_5 = arith.constant 0 : index
    %c0_6 = arith.constant 0 : index
    %4 = vector.load %arg4[%c0_5, %c0_6] : memref<4x1xf32, #tpu.memory_space<vmem>>, vector<4x1xf32>
    %cst = arith.constant dense<0xFF800000> : vector<256xf32>
    %5 = vector.multi_reduction <maximumf>, %1, %cst [0] : vector<4x256xf32> to vector<256xf32>
    %6 = vector.shape_cast %5 : vector<256xf32> to vector<1x256xf32>
    %7 = vector.broadcast %6 : vector<1x256xf32> to vector<4x256xf32>
    %8 = arith.subf %1, %7 : vector<4x256xf32>
    %9 = math.exp %8 : vector<4x256xf32>
    %cst_7 = arith.constant dense<0.000000e+00> : vector<256xf32>
    %10 = vector.multi_reduction <add>, %9, %cst_7 [0] : vector<4x256xf32> to vector<256xf32>
    %11 = vector.shape_cast %10 : vector<256xf32> to vector<1x256xf32>
    %12 = math.log %11 : vector<1x256xf32>
    %13 = tpu.iota {dimensions = array<i32: 0>} : vector<4x256xi32>
    %14 = vector.broadcast %3 : vector<1x256xi32> to vector<4x256xi32>
    %15 = arith.cmpi eq, %13, %14 : vector<4x256xi32>
    %cst_8 = arith.constant 0.000000e+00 : f32
    %16 = vector.broadcast %cst_8 : f32 to vector<4x256xf32>
    %17 = arith.select %15, %8, %16 : vector<4x256xi1>, vector<4x256xf32>
    %cst_9 = arith.constant dense<0.000000e+00> : vector<256xf32>
    %18 = vector.multi_reduction <add>, %17, %cst_9 [0] : vector<4x256xf32> to vector<256xf32>
    %19 = vector.shape_cast %18 : vector<256xf32> to vector<1x256xf32>
    %cst_10 = arith.constant 0.000000e+00 : f32
    %20 = vector.shape_cast %4 : vector<4x1xf32> to vector<4x1xf32>
    %21 = vector.broadcast %20 : vector<4x1xf32> to vector<4x256xf32>
    %22 = vector.broadcast %cst_10 : f32 to vector<4x256xf32>
    %23 = arith.select %15, %21, %22 : vector<4x256xi1>, vector<4x256xf32>
    %cst_11 = arith.constant dense<0.000000e+00> : vector<256xf32>
    %24 = vector.multi_reduction <add>, %23, %cst_11 [0] : vector<4x256xf32> to vector<256xf32>
    %25 = vector.shape_cast %24 : vector<256xf32> to vector<1x256xf32>
    %26 = arith.subf %12, %19 : vector<1x256xf32>
    %27 = arith.mulf %26, %25 : vector<1x256xf32>
    %28 = tpu.iota {dimensions = array<i32: 1>} : vector<1x256xi32>
    %c256_i32 = arith.constant 256 : i32
    %29 = arith.muli %arg1, %c256_i32 : i32
    %30 = vector.broadcast %29 : i32 to vector<1x256xi32>
    %31 = arith.addi %30, %28 : vector<1x256xi32>
    %c256_i32_12 = arith.constant 256 : i32
    %32 = vector.broadcast %c256_i32_12 : i32 to vector<1x256xi32>
    %33 = arith.cmpi slt, %31, %32 : vector<1x256xi32>
    %cst_13 = arith.constant 0.000000e+00 : f32
    %34 = vector.broadcast %cst_13 : f32 to vector<1x256xf32>
    %35 = arith.select %33, %27, %34 : vector<1x256xi1>, vector<1x256xf32>
    %36 = vector.shape_cast %35 : vector<1x256xf32> to vector<1x1x256xf32>
    %cst_14 = arith.constant dense<0.000000e+00> : vector<1xf32>
    %37 = vector.multi_reduction <add>, %36, %cst_14 [1, 2] : vector<1x1x256xf32> to vector<1xf32>
    %38 = vector.shape_cast %37 : vector<1xf32> to vector<1x1x1xf32>
    %39 = vector.extract %38[0, 0, 0] : f32 from vector<1x1x1xf32>
    %cst_15 = arith.constant 1.000000e+00 : f32
    %40 = vector.broadcast %cst_15 : f32 to vector<1x1x8x128xf32>
    %41 = vector.broadcast %39 : f32 to vector<1x1x8x128xf32>
    %42 = arith.mulf %40, %41 : vector<1x1x8x128xf32>
    %c0_16 = arith.constant 0 : index
    %c0_17 = arith.constant 0 : index
    %c0_18 = arith.constant 0 : index
    %c0_19 = arith.constant 0 : index
    %43 = vector.load %arg5[%c0_16, %c0_17, %c0_18, %c0_19] : memref<1x1x8x128xf32, #tpu.memory_space<vmem>>, vector<1x1x8x128xf32>
    tpu.vector_store %arg5[%c0_16, %c0_17, %c0_18, %c0_19], %42 {strides = array<i32>} : memref<1x1x8x128xf32, #tpu.memory_space<vmem>>, vector<1x1x8x128xf32>,
    return
  }
  func.func @transform_0(%arg0: i32, %arg1: i32) -> (i32, i32, i32) {
    %c0_i32 = arith.constant 0 : i32
    %c0_i32_0 = arith.constant 0 : i32
    return %arg0, %c0_i32, %arg1 : i32, i32, i32
  }
  func.func @transform_1(%arg0: i32, %arg1: i32) -> (i32, i32, i32) {
    %c0_i32 = arith.constant 0 : i32
    %c0_i32_0 = arith.constant 0 : i32
    return %arg0, %c0_i32, %arg1 : i32, i32, i32
  }
  func.func @transform_2(%arg0: i32, %arg1: i32) -> (i32, i32) {
    %c0_i32 = arith.constant 0 : i32
    %c0_i32_0 = arith.constant 0 : i32
    %c0_i32_1 = arith.constant 0 : i32
    return %c0_i32, %c0_i32_0 : i32, i32
  }
  func.func @transform_3(%arg0: i32, %arg1: i32) -> (i32, i32, i32, i32) {
    %c0_i32 = arith.constant 0 : i32
    %c0_i32_0 = arith.constant 0 : i32
    %c0_i32_1 = arith.constant 0 : i32
    return %arg0, %arg1, %c0_i32, %c0_i32_0 : i32, i32, i32, i32
  }
}

</mosaic_0001>

<llo_original>
// kernel: tpu_custom_call.1
$region0: #{tpu_custom_call.1}
  #allocation0 [shape = 'u32[]', space=smem, size = 0x4, offset = 0x4, fixed_abs, tag = 'smem constant byte address 0x4 - core index']
  #allocation1 [shape = 'u32[72,128]{1,0:T(1,128)}', space=vmem, size = 0x9000, scoped, tag = 'internal scratch']
  %s0 = inlined_call_operand.hbm [shape: f32[2,4,256], index: 0, kind: input, shape index: {}]
  %s1 = inlined_call_operand.vmem [shape: s32[2,1,256], index: 1, kind: input, shape index: {}]
  %s2 = inlined_call_operand.vmem [shape: f32[4,1], index: 2, kind: input, shape index: {}]
  %s3 = inlined_call_operand.hbm [shape: f32[2,1,8,128], index: 3, kind: output, shape index: {}]
  %s4 = sld [smem:[#allocation0]]
  $region49: #{tpu_custom_call.1} parent=0
    _
  %s6 = ssub.s32 1, %s4
  %s7 = scalar_select 0, %s6, %s4
  $region1: #{tpu_custom_call.1} parent=0
    #allocation2 [shape = 'u8[8192]{0}', space=vmem, size = 0x2000, scoped, tag = 'input window, operand 0']
    #allocation3 [shape = 's32[2]{0}', space=sflag, size = 0x8, scoped, tag = 'scoped memory for tpu_custom_call.1']
    #allocation4 [shape = 's32[2]{0}', space=sflag, size = 0x8, scoped, tag = 'scoped memory for tpu_custom_call.1']
    #allocation5 [shape = 'u8[8192]{0}', space=vmem, size = 0x2000, scoped, tag = 'output window, operand 0']
    %8 = vsyncpa [#allocation3], 0
    %s9 = scalar_lea.sflag [#allocation3], 1
    %10 = vsyncpa %s9, 0
    %11 = vsyncpa [#allocation4], 0
    %s12 = scalar_lea.sflag [#allocation4], 1
    %13 = vsyncpa %s12, 0
    loop: start=0, step=1, limit=4
    $region2: #{tpu_custom_call.1} parent=1 // loop_pre_header
      _
    $region3: #{tpu_custom_call.1} parent=1 // loop_header
      %s15 = sphi 0, %s19
      %p16 = scmp.ge.s32.totalorder %s15, 4
      %s22 = sphi 0, %s34
      %s23 = sphi 0, %s30
      %s24 = sphi 0, %s22
      %s25 = sphi 0, %s23
      %s26 = sphi 0, %s24
      %s27 = sphi 0, %s25
      %s39 = sphi 0, %s41
      %s42 = sphi 0, %s39
      %s43 = sphi 0, %s42
      %s59 = sphi 0, %s43
      %s67 = sphi 0, %s69
      %s70 = sphi 0, %s67
      %s71 = sphi 0, %s70
      %s87 = sphi 0, %s71
      %s91 = sphi 0, %s91
      %s93 = sphi 0, %s91
      %s94 = sphi 0, %s93
      %s108 = sphi 0, %s94
      %s116 = sphi 0, %s118
      %s119 = sphi 0, %s116
      %s120 = sphi 0, %s119
      %s136 = sphi 0, %s120
    $region4: #{tpu_custom_call.1} parent=1 // loop_header_branch
      %18 = sbr.rel (%p16) target = $region8
    $region5: #{tpu_custom_call.1} parent=1 // loop_body
      %s20 = ssub.s32 %s15, 1
      %s21 = ssub.s32 %s15, 2
      %s28 = sadd.s32 1, %s23
      %p29 = scmp.ge.s32.totalorder %s28, 1
      %s30 = scalar_select %p29, 0, %s28
      %s31 = sadd.s32 1, %s22
      %s32 = scalar_select %p29, %s31, %s22
      %p33 = scmp.ge.s32.totalorder %s32, 2
      %s34 = scalar_select %p33, 0, %s32
      %s35 = ssub.s32 %s22, %s34
      %s36 = ssub.s32 %s23, %s30
      %s37 = sor.u32 %s35, %s36
      %p38 = scmp.eq.s32.totalorder %s37, 0
      %s40 = sadd.s32 %s39, 1
      %s41 = scalar_select %p38, %s39, %s40
      %p44 = pneg %p38
      %p45 = scmp.eq.s32.totalorder %s15, 1
      %p46 = por %p44, %p45
      %p47 = scmp.ne.s32.totalorder %s39, %s42
      %p48 = scmp.eq.s32.totalorder %s15, 0
      %p49 = por %p47, %p48
      %p50 = scmp.ne.s32.totalorder %s39, %s42
      %p51 = scmp.eq.s32.totalorder %s20, 1
      %p52 = por %p50, %p51
      %p53 = scmp.ne.s32.totalorder %s42, %s43
      %p54 = scmp.eq.s32.totalorder %s20, 0
      %p55 = por %p53, %p54
      %p56 = scmp.ne.s32.totalorder %s42, %s43
      %p57 = scmp.eq.s32.totalorder %s21, 1
      %p58 = por %p56, %p57
      %p60 = scmp.ne.s32.totalorder %s43, %s59
      %p61 = scmp.eq.s32.totalorder %s21, 0
      %p62 = por %p60, %p61
      %s63 = ssub.s32 %s22, %s34
      %s64 = ssub.s32 %s23, %s30
      %s65 = sor.u32 %s63, %s64
      %p66 = scmp.eq.s32.totalorder %s65, 0
      %s68 = sadd.s32 %s67, 1
      %s69 = scalar_select %p66, %s67, %s68
      %p72 = pneg %p66
      %p73 = scmp.eq.s32.totalorder %s15, 1
      %p74 = por %p72, %p73
      %p75 = scmp.ne.s32.totalorder %s67, %s70
      %p76 = scmp.eq.s32.totalorder %s15, 0
      %p77 = por %p75, %p76
      %p78 = scmp.ne.s32.totalorder %s67, %s70
      %p79 = scmp.eq.s32.totalorder %s20, 1
      %p80 = por %p78, %p79
      %p81 = scmp.ne.s32.totalorder %s70, %s71
      %p82 = scmp.eq.s32.totalorder %s20, 0
      %p83 = por %p81, %p82
      %p84 = scmp.ne.s32.totalorder %s70, %s71
      %p85 = scmp.eq.s32.totalorder %s21, 1
      %p86 = por %p84, %p85
      %p88 = scmp.ne.s32.totalorder %s71, %s87
      %p89 = scmp.eq.s32.totalorder %s21, 0
      %p90 = por %p88, %p89
      %s92 = sadd.s32 %s91, 1
      %p95 = scmp.eq.s32.totalorder %s15, 1
      %p96 = scmp.ne.s32.totalorder %s91, %s93
      %p97 = scmp.eq.s32.totalorder %s15, 0
      %p98 = por %p96, %p97
      %p99 = scmp.ne.s32.totalorder %s91, %s93
      %p100 = scmp.eq.s32.totalorder %s20, 1
      %p101 = por %p99, %p100
      %p102 = scmp.ne.s32.totalorder %s93, %s94
      %p103 = scmp.eq.s32.totalorder %s20, 0
      %p104 = por %p102, %p103
      %p105 = scmp.ne.s32.totalorder %s93, %s94
      %p106 = scmp.eq.s32.totalorder %s21, 1
      %p107 = por %p105, %p106
      %p109 = scmp.ne.s32.totalorder %s94, %s108
      %p110 = scmp.eq.s32.totalorder %s21, 0
      %p111 = por %p109, %p110
      %s112 = ssub.s32 %s22, %s34
      %s113 = ssub.s32 %s23, %s30
      %s114 = sor.u32 %s112, %s113
      %p115 = scmp.eq.s32.totalorder %s114, 0
      %s117 = sadd.s32 %s116, 1
      %s118 = scalar_select %p115, %s116, %s117
      %p121 = pneg %p115
      %p122 = scmp.eq.s32.totalorder %s15, 1
      %p123 = por %p121, %p122
      %p124 = scmp.ne.s32.totalorder %s116, %s119
      %p125 = scmp.eq.s32.totalorder %s15, 0
      %p126 = por %p124, %p125
      %p127 = scmp.ne.s32.totalorder %s116, %s119
      %p128 = scmp.eq.s32.totalorder %s20, 1
      %p129 = por %p127, %p128
      %p130 = scmp.ne.s32.totalorder %s119, %s120
      %p131 = scmp.eq.s32.totalorder %s20, 0
      %p132 = por %p130, %p131
      %p133 = scmp.ne.s32.totalorder %s119, %s120
      %p134 = scmp.eq.s32.totalorder %s21, 1
      %p135 = por %p133, %p134
      %p137 = scmp.ne.s32.totalorder %s120, %s136
      %p138 = scmp.eq.s32.totalorder %s21, 0
      %p139 = por %p137, %p138
      %p140 = scmp.le.s32.totalorder 1, %s15
      %p141 = scmp.lt.s32.totalorder %s15, 3
      %p142 = pnand %p140, %p141
      %p143 = pneg %p142
      // Predicated region
      $region9: #{tpu_custom_call.1} parent=5 // pred_check
        _
      $region10: #{tpu_custom_call.1} parent=5 // pred_check_branch
        %145 = sbr.rel (%p142) target = $region12
      $region11: #{tpu_custom_call.1} parent=5 // pred_region
        %s146 = ssub.s32 %s15, 1
        // Predicated region
        $region13: #{tpu_custom_call.1} parent=11 // pred_check
          %p147 = pneg %p104
        $region14: #{tpu_custom_call.1} parent=11 // pred_check_branch
          %149 = sbr.rel (%p147) target = $region16
        $region15: #{tpu_custom_call.1} parent=11 // pred_region
          _
        $region16: #{tpu_custom_call.1} parent=11 // pred_fallthru
          _
      $region12: #{tpu_custom_call.1} parent=5 // pred_fallthru
        _
      %p150 = scmp.lt.s32.totalorder %s15, 2
      // Predicated region
      $region17: #{tpu_custom_call.1} parent=5 // pred_check
        %p151 = pneg %p150
      $region18: #{tpu_custom_call.1} parent=5 // pred_check_branch
        %153 = sbr.rel (%p151) target = $region20
      $region19: #{tpu_custom_call.1} parent=5 // pred_region
        // Predicated region
        $region21: #{tpu_custom_call.1} parent=19 // pred_check
          %p154 = pneg %p49
        $region22: #{tpu_custom_call.1} parent=19 // pred_check_branch
          %156 = sbr.rel (%p154) target = $region24
        $region23: #{tpu_custom_call.1} parent=19 // pred_region
          %s157 = sand.u32 %s39, 1
          %s158 = scalar_lea.sflag [#allocation3], %s157
          %s159 = sand.u32 %s39, 1
          %s160 = smul.addr %s159, 8
          %s161 = scalar_lea.vmem [#allocation2], %s160
          %s162 = smul.u32 2, %s23
          %164 = vsyncadd %s158, 0
          %s165 = smul.addr %s22, 2
          %s166 = sadd.s32 %s162, %s165
          %s167 = smul.addr %s166, 4
          %s168 = scalar_lea.hbm %s0, %s167
          %s170 = sshll.u32 %s168, 4
          %s171 = int_to_ptr.hbm [resolvable:$true] %s170
          %s172 = sshll.u32 %s161, 4
          %s173 = int_to_ptr.vmem [resolvable:$true] %s172
          %175 = dma.hbm_to_vmem [thread:$0]  %s171, 128, %s173, %s158
        $region24: #{tpu_custom_call.1} parent=19 // pred_fallthru
          _
        // Predicated region
        $region25: #{tpu_custom_call.1} parent=19 // pred_check
          %p176 = pneg %p77
        $region26: #{tpu_custom_call.1} parent=19 // pred_check_branch
          %178 = sbr.rel (%p176) target = $region28
        $region27: #{tpu_custom_call.1} parent=19 // pred_region
          %s179 = smul.u32 2, %s23
          %p180 = scmp.lt.s32.totalorder %s22, 1
          %s181 = scalar_select %p180, %s22, 1
          %p182 = scmp.lt.s32.totalorder %s179, 1
          %s183 = scalar_select %p182, %s179, 1
          %s184 = smul.addr %s181, 2
          %s185 = sadd.s32 %s183, %s184
          %s186 = scalar_lea.vmem %s1, %s185
          %s187 = smul.u32 2, %s23
        $region28: #{tpu_custom_call.1} parent=19 // pred_fallthru
          _
      $region20: #{tpu_custom_call.1} parent=5 // pred_fallthru
        _
      %p188 = scmp.le.s32.totalorder 1, %s15
      %p189 = scmp.lt.s32.totalorder %s15, 3
      %p190 = pnand %p188, %p189
      %p191 = pneg %p190
      // Predicated region
      $region29: #{tpu_custom_call.1} parent=5 // pred_check
        _
      $region30: #{tpu_custom_call.1} parent=5 // pred_check_branch
        %193 = sbr.rel (%p190) target = $region32
      $region31: #{tpu_custom_call.1} parent=5 // pred_region
        %s194 = ssub.s32 %s15, 1
        %s195 = sand.u32 %s42, 1
        %s196 = scalar_lea.sflag [#allocation3], %s195
        %s197 = sand.u32 %s42, 1
        %s198 = smul.addr %s197, 8
        %s199 = scalar_lea.vmem [#allocation2], %s198
        // Predicated region
        $region33: #{tpu_custom_call.1} parent=31 // pred_check
          %p200 = pneg %p55
        $region34: #{tpu_custom_call.1} parent=31 // pred_check_branch
          %202 = sbr.rel (%p200) target = $region36
        $region35: #{tpu_custom_call.1} parent=31 // pred_region
          %204 = dma.done %s196, 128
        $region36: #{tpu_custom_call.1} parent=31 // pred_fallthru
          _
        %s205 = sand.u32 %s42, 1
        %s206 = scalar_lea.sflag [#allocation3], %s205
        %s207 = sand.u32 %s42, 1
        %s208 = smul.addr %s207, 8
        %s209 = scalar_lea.vmem [#allocation2], %s208
        %p210 = pneg %p55
        %p211 = pneg %p52
        %s212 = smul.u32 2, %s25
        %p213 = scmp.lt.s32.totalorder %s24, 1
        %s214 = scalar_select %p213, %s24, 1
        %p215 = scmp.lt.s32.totalorder %s212, 1
        %s216 = scalar_select %p215, %s212, 1
        %s217 = smul.addr %s214, 2
        %s218 = sadd.s32 %s216, %s217
        %s219 = scalar_lea.vmem %s1, %s218
        %p220 = pneg %p83
        %p221 = pneg %p80
        %p222 = pneg %p104
        %p223 = pneg %p101
        %p224 = pneg %p132
        %p225 = pneg %p129
        %s226 = sand.u32 %s119, 1
        %s227 = scalar_lea.sflag [#allocation4], %s226
        %s228 = sand.u32 %s119, 1
        %s229 = smul.addr %s228, 8
        %s230 = scalar_lea.vmem [#allocation5], %s229
        %s231 = smul.u32 2, %s25
        %s232 = smul.u32 2, %s25
        %p233 = scmp.lt.s32.totalorder %s24, 1
        %s234 = scalar_select %p233, %s24, 1
        %p235 = scmp.lt.s32.totalorder %s232, 1
        %s236 = scalar_select %p235, %s232, 1
        %s237 = smul.addr %s234, 2
        %s238 = sadd.s32 %s236, %s237
        %s239 = scalar_lea.vmem %s1, %s238
        %s240 = smul.u32 2, %s25
        %v241 = vld [vmem:[%s199] sm:$0xff]
        %v242 = vld [vmem:[%s239] sm:$0x3]
        %v243 = vld [vmem:[%s2] sm:$0xf]
        %245 = vst [vmem:[#allocation1] ss:$2 sm:$0xff] %v241
        %v246 = vld.sshfl [vmem:[#allocation1] sm:$0xff pattern:$0x75316420]
        %v247 = vld.sshfl [vmem:[#allocation1 + $0x8] sm:$0xff pattern:$0x75316420]
        %vm250 = vcmask 1043456
        %v251 = vsel %vm250, %v246, -inf
        %v252 = vrot.slane %v251, 4
        %v253 = vmax.f32 %v251, %v252
        %v254 = vrot.slane %v253, 2
        %v255 = vmax.f32 %v253, %v254
        %v256 = vrot.slane %v255, 1
        %v257 = vmax.f32 %v255, %v256
        %v258 = vsel %vm250, %v247, -inf
        %v259 = vrot.slane %v258, 4
        %v260 = vmax.f32 %v258, %v259
        %v261 = vrot.slane %v260, 2
        %v262 = vmax.f32 %v260, %v261
        %v263 = vrot.slane %v262, 1
        %v264 = vmax.f32 %v262, %v263
        %v267 = vrot.slane %v264, 4
        %v268 = vsel %vm250, %v257, %v267
        %v270 = vsub.f32 %v241, %v268
        %v271 = vmul.f32 %v270, 1.442695
        %v272 = vpow.pop %v271
        %274 = vst [vmem:[#allocation1] ss:$2 sm:$0xff] %v272
        %v275 = vld.sshfl [vmem:[#allocation1] sm:$0xff pattern:$0x75316420]
        %v276 = vld.sshfl [vmem:[#allocation1 + $0x8] sm:$0xff pattern:$0x75316420]
        %v279 = vsel %vm250, %v275, 0.0
        %v280 = vrot.slane %v279, 4
        %v281 = vadd.f32 %v279, %v280
        %v282 = vrot.slane %v281, 2
        %v283 = vadd.f32 %v281, %v282
        %v284 = vrot.slane %v283, 1
        %v285 = vadd.f32 %v283, %v284
        %v286 = vsel %vm250, %v276, 0.0
        %v287 = vrot.slane %v286, 4
        %v288 = vadd.f32 %v286, %v287
        %v289 = vrot.slane %v288, 2
        %v290 = vadd.f32 %v288, %v289
        %v291 = vrot.slane %v290, 1
        %v292 = vadd.f32 %v290, %v291
        %v293 = vlog2.pop %v285
        %v294 = vmul.f32 %v293, 0.6931472
        %v295 = vlog2.pop %v292
        %v296 = vmul.f32 %v295, 0.6931472
        %v297 = vlaneseq
        %v298 = vshrl.u32 %v297, 7
        %v299 = vperm.slane %v242, 0
        %v300 = vperm.slane %v242, 1
        %vm301 = vcmp.eq.s32.totalorder %v298, %v299
        %vm302 = vcmp.eq.s32.totalorder %v298, %v300
        %304 = vst [vmem:[#allocation1] ss:$2 sm:$0xff] %v270
        %v305 = vld.sshfl [vmem:[#allocation1] sm:$0xff pattern:$0x75316420]
        %v306 = vld.sshfl [vmem:[#allocation1 + $0x8] sm:$0xff pattern:$0x75316420]
        %v309 = vsel %vm301, %v305, 0.0
        %v310 = vsel %vm302, %v306, 0.0
        %v311 = vsel %vm250, %v309, 0.0
        %v312 = vrot.slane %v311, 4
        %v313 = vadd.f32 %v311, %v312
        %v314 = vrot.slane %v313, 2
        %v315 = vadd.f32 %v313, %v314
        %v316 = vrot.slane %v315, 1
        %v317 = vadd.f32 %v315, %v316
        %v318 = vsel %vm250, %v310, 0.0
        %v319 = vrot.slane %v318, 4
        %v320 = vadd.f32 %v318, %v319
        %v321 = vrot.slane %v320, 2
        %v322 = vadd.f32 %v320, %v321
        %v323 = vrot.slane %v322, 1
        %v324 = vadd.f32 %v322, %v323
        %326 = vset.pattern.permute.xlu0 0
        %327 = vperm.xlu0 %326, %v243
        %v328 = vpop.permute.xlu0 %327
        %v330 = vsel %vm301, %v328, 0.0
        %v331 = vsel %vm302, %v328, 0.0
        %v332 = vsel %vm250, %v330, 0.0
        %v333 = vrot.slane %v332, 4
        %v334 = vadd.f32 %v332, %v333
        %v335 = vrot.slane %v334, 2
        %v336 = vadd.f32 %v334, %v335
        %v337 = vrot.slane %v336, 1
        %v338 = vadd.f32 %v336, %v337
        %v339 = vsel %vm250, %v331, 0.0
        %v340 = vrot.slane %v339, 4
        %v341 = vadd.f32 %v339, %v340
        %v342 = vrot.slane %v341, 2
        %v343 = vadd.f32 %v341, %v342
        %v344 = vrot.slane %v343, 1
        %v345 = vadd.f32 %v343, %v344
        %v346 = vsub.f32 %v294, %v317
        %v347 = vsub.f32 %v296, %v324
        %v348 = vmul.f32 %v346, %v338
        %v349 = vmul.f32 %v347, %v345
        %v350 = vlaneseq
        %v351 = vand.u32 %v350, 127
        %v352 = vadd.s32 %v351, 128
        %s353 = smul.u32 %s25, 256
        %v354 = vstv %s353
        %v355 = vadd.s32 %v354, %v351
        %v356 = vadd.s32 %v354, %v352
        %vm357 = vcmp.lt.s32.totalorder %v355, 256
        %vm358 = vcmp.lt.s32.totalorder %v356, 256
        %v359 = vsel %vm357, %v348, 0.0
        %v360 = vsel %vm358, %v349, 0.0
        %vm361 = vcmask 1040384
        %v362 = vsel %vm361, %v359, 0.0
        %v363 = vsel %vm361, %v360, 0.0
        %v364 = vadd.f32 %v362, %v363
        %365 = vadd.xlane.f32.xlu0 %v364
        %v366 = vpop.xlane.xlu0 %365
        %v367 = vrot.slane %v366, 4
        %v368 = vadd.f32 %v366, %v367
        %v369 = vrot.slane %v368, 2
        %v370 = vadd.f32 %v368, %v369
        %v371 = vrot.slane %v370, 1
        %v372 = vadd.f32 %v370, %v371
        %s373 = vtos %v372
        %v374 = vstv %s373
        %375 = vst [vmem:[%s230] sm:$0xff] %v374
        %s376 = sand.u32 %s119, 1
        %s377 = scalar_lea.sflag [#allocation4], %s376
        %s378 = sand.u32 %s119, 1
        %s379 = smul.addr %s378, 8
        %s380 = scalar_lea.vmem [#allocation5], %s379
        // Predicated region
        $region37: #{tpu_custom_call.1} parent=31 // pred_check
          %p381 = pneg %p129
        $region38: #{tpu_custom_call.1} parent=31 // pred_check_branch
          %383 = sbr.rel (%p381) target = $region40
        $region39: #{tpu_custom_call.1} parent=31 // pred_region
          %385 = vsyncadd %s377, 0
          %s386 = sadd.s32 %s25, %s24
          %s387 = smul.addr %s386, 8
          %s388 = scalar_lea.hbm %s3, %s387
          %s390 = sshll.u32 %s380, 4
          %s391 = int_to_ptr.vmem [resolvable:$true] %s390
          %s392 = sshll.u32 %s388, 4
          %s393 = int_to_ptr.hbm [resolvable:$true] %s392
          %395 = dma.vmem_to_hbm [thread:$0]  %s391, 128, %s393, %s377
        $region40: #{tpu_custom_call.1} parent=31 // pred_fallthru
          _
      $region32: #{tpu_custom_call.1} parent=5 // pred_fallthru
        _
      %p396 = scmp.le.s32.totalorder 2, %s15
      // Predicated region
      $region41: #{tpu_custom_call.1} parent=5 // pred_check
        %p397 = pneg %p396
      $region42: #{tpu_custom_call.1} parent=5 // pred_check_branch
        %399 = sbr.rel (%p397) target = $region44
      $region43: #{tpu_custom_call.1} parent=5 // pred_region
        %s400 = ssub.s32 %s15, 2
        // Predicated region
        $region45: #{tpu_custom_call.1} parent=43 // pred_check
          %p401 = pneg %p135
        $region46: #{tpu_custom_call.1} parent=43 // pred_check_branch
          %403 = sbr.rel (%p401) target = $region48
        $region47: #{tpu_custom_call.1} parent=43 // pred_region
          %s404 = sand.u32 %s120, 1
          %s405 = scalar_lea.sflag [#allocation4], %s404
          %s406 = sand.u32 %s120, 1
          %s407 = smul.addr %s406, 8
          %s408 = scalar_lea.vmem [#allocation5], %s407
          %410 = dma.done %s405, 128
        $region48: #{tpu_custom_call.1} parent=43 // pred_fallthru
          _
      $region44: #{tpu_custom_call.1} parent=5 // pred_fallthru
        _
    $region6: #{tpu_custom_call.1} parent=1 // loop_footer
      %s19 = sadd.s32 1, %s15
    $region7: #{tpu_custom_call.1} parent=1 // loop_footer_branch
      %14 = sbr.rel target = $region3
    $region8: #{tpu_custom_call.1} parent=1 // loop_exit
      _
    %411 = vsyncpa [#allocation3], 1
    %s412 = scalar_lea.sflag [#allocation3], 1
    %413 = vsyncpa %s412, 1
    %414 = vsyncpa [#allocation4], 1
    %s415 = scalar_lea.sflag [#allocation4], 1
    %416 = vsyncpa %s415, 1

</llo_original>
